<compile_context>
chip_gen: v5e
topology: v5e:2x2
jax: 0.10.0
libtpu: 0.0.40
codegen_flags: <defaults>
</compile_context>

<pallas_src>
import jax
import jax.numpy as jnp
from jax.experimental import pallas as pl
from jax.experimental.pallas import tpu as pltpu

LANE = 128
SUBLANE = 8


def dqn_kernel(x_ref, w1_ref, b1_ref, w2_ref, b2_ref, w3_ref, b3_ref, o_ref):
    bt = x_ref.shape[0]
    state_dim = x_ref.shape[1]
    hidden = w1_ref.shape[1]
    x = x_ref[...]                                             # (Bt, S) f32

    # ---- fc1 + relu: VPU broadcast-FMA (tiny K; MXU would be >96% padding) --
    h1 = jnp.broadcast_to(b1_ref[...], (bt, hidden))           # hoisted once
    for k in range(state_dim):                                 # static unroll
        h1 = h1 + x[:, k:k + 1] * w1_ref[k:k + 1, :]
    h1 = jnp.maximum(h1, 0.0)

    # ---- fc2 + relu: MXU (operands in weight dtype, e.g. bf16), f32 acc -----
    h2 = jnp.dot(h1.astype(w2_ref.dtype), w2_ref[...],
                 preferred_element_type=jnp.float32)
    h2 = jnp.maximum(h2 + b2_ref[...], 0.0)

    # ---- fc3: MXU, narrow 8-lane-padded output ------------------------------
    out = jnp.dot(h2.astype(w3_ref.dtype), w3_ref[...],
                  preferred_element_type=jnp.float32)
    o_ref[...] = (out + b3_ref[...]).astype(o_ref.dtype)


def prepare_params(params, *, use_bf16=True):
    """One-time prep (hoisted out of the per-call forward): pad fc3 to an
    8-lane-multiple output width; optionally store MXU weights as bf16."""
    w1, b1 = params["w1"], params["b1"]
    w2, b2 = params["w2"], params["b2"]
    w3, b3 = params["w3"], params["b3"]
    hidden = w1.shape[1]
    action_dim = w3.shape[1]

    n_pad = max(SUBLANE, pl.cdiv(action_dim, SUBLANE) * SUBLANE)
    w3p = jnp.zeros((hidden, n_pad), w3.dtype).at[:, :action_dim].set(w3)
    b3p = jnp.zeros((1, n_pad), b3.dtype).at[:, :action_dim].set(b3)

    mx_dtype = jnp.bfloat16 if use_bf16 else w2.dtype
    return {
        "w1": w1, "b1": b1,
        "w2": w2.astype(mx_dtype), "b2": b2,
        "w3": w3p.astype(mx_dtype), "b3": b3p,
        "action_dim": action_dim,
    }


def dqn_forward(x, prep, *, block_b=2048):
    """x: (B, state_dim) f32.  prep: output of prepare_params()."""
    w1, b1 = prep["w1"], prep["b1"]
    w2, b2 = prep["w2"], prep["b2"]
    w3, b3 = prep["w3"], prep["b3"]
    action_dim = prep["action_dim"]
    B, state_dim = x.shape
    hidden = w1.shape[1]
    n_pad = w3.shape[1]

    # Batch tiling: rows per tile are a multiple of 8 sublanes (defensive
    # rounding of user-supplied block_b); prefer an even tile count when the
    # batch is large enough so both v7x TensorCores get work.
    b8 = pl.cdiv(B, SUBLANE) * SUBLANE
    block_b = max(SUBLANE, (int(block_b) // SUBLANE) * SUBLANE)
    num_tiles = pl.cdiv(b8, min(block_b, b8))
    if b8 >= 2 * 256 and num_tiles % 2 == 1:
        num_tiles += 1
    bt = pl.cdiv(pl.cdiv(b8, num_tiles), SUBLANE) * SUBLANE
    b_pad = num_tiles * bt
    if b_pad != B:
        x = jnp.pad(x, ((0, b_pad - B), (0, 0)))

    out = pl.pallas_call(
        dqn_kernel,
        out_shape=jax.ShapeDtypeStruct((b_pad, n_pad), jnp.float32),
        grid=(num_tiles,),
        in_specs=[
            pl.BlockSpec((bt, state_dim), lambda i: (i, 0)),      # x: tiled over B
            pl.BlockSpec((state_dim, hidden), lambda i: (0, 0)),  # weights stay
            pl.BlockSpec((1, hidden), lambda i: (0, 0)),          #  VMEM-resident
            pl.BlockSpec((hidden, hidden), lambda i: (0, 0)),
            pl.BlockSpec((1, hidden), lambda i: (0, 0)),
            pl.BlockSpec((hidden, n_pad), lambda i: (0, 0)),
            pl.BlockSpec((1, n_pad), lambda i: (0, 0)),
        ],
        out_specs=pl.BlockSpec((bt, n_pad), lambda i: (i, 0)),
        compiler_params=pltpu.CompilerParams(
            dimension_semantics=("parallel",)),  # shard batch tiles across TCs (v7x)
    )(x, w1, b1, w2, b2, w3, b3)

    return out[:B, :action_dim]


def init_params(key, state_dim, action_dim, hidden=128):
    """Deterministic init mimicking nn.Linear's U(-1/sqrt(fan_in), 1/sqrt(fan_in))."""
    ks = jax.random.split(key, 6)

    def linear(kw, kb, fan_in, fan_out):
        bound = 1.0 / jnp.sqrt(jnp.float32(fan_in))
        w = jax.random.uniform(kw, (fan_in, fan_out), jnp.float32, -bound, bound)
        b = jax.random.uniform(kb, (1, fan_out), jnp.float32, -bound, bound)
        return w, b

    w1, b1 = linear(ks[0], ks[1], state_dim, hidden)
    w2, b2 = linear(ks[2], ks[3], hidden, hidden)
    w3, b3 = linear(ks[4], ks[5], hidden, action_dim)
    return {"w1": w1, "b1": b1, "w2": w2, "b2": b2, "w3": w3, "b3": b3}


def dqn_reference(x, p):
    h1 = jnp.maximum(x @ p["w1"] + p["b1"], 0.0)
    h2 = jnp.maximum(h1 @ p["w2"] + p["b2"], 0.0)
    return h2 @ p["w3"] + p["b3"]


if __name__ == "__main__":
    key = jax.random.PRNGKey(0)
    k_params, k_x = jax.random.split(key)

    batch = 2
    state_dim = 4    # CartPole observation dim
    action_dim = 2   # CartPole action dim

    params = init_params(k_params, state_dim, action_dim)
    x = jax.random.normal(k_x, (batch, state_dim), jnp.float32)

    # Exact path (f32 MXU operands): tight numerical check.
    prep_f32 = prepare_params(params, use_bf16=False)
    out = jax.block_until_ready(dqn_forward(x, prep_f32))
    ref = dqn_reference(x, params)
    assert out.shape == (batch, action_dim), out.shape
    assert jnp.allclose(out, ref, atol=1e-5, rtol=1e-5), (out, ref)

    # Performance path (bf16 MXU operands, f32 accumulation) on a multi-tile
    # batch to exercise the batch grid / even-tile-count logic.
    prep_bf16 = prepare_params(params, use_bf16=True)
    k_big = jax.random.fold_in(k_x, 1)
    xb = jax.random.normal(k_big, (1037, state_dim), jnp.float32)
    outb = jax.block_until_ready(dqn_forward(xb, prep_bf16))
    refb = dqn_reference(xb, params)
    assert outb.shape == (1037, action_dim), outb.shape
    assert jnp.allclose(outb, refb, atol=3e-2, rtol=3e-2), (
        float(jnp.max(jnp.abs(outb - refb))))

    print("KERNEL_OK")
</pallas_src>

<mosaic_0001>
module attributes {stable_mosaic.version = 11 : i64} {
  func.func @dqn_kernel(%arg0: i32, %arg1: memref<8x4xf32, #tpu.memory_space<vmem>>, %arg2: memref<4x128xf32, #tpu.memory_space<vmem>>, %arg3: memref<1x128xf32, #tpu.memory_space<vmem>>, %arg4: memref<128x128xf32, #tpu.memory_space<vmem>>, %arg5: memref<1x128xf32, #tpu.memory_space<vmem>>, %arg6: memref<128x8xf32, #tpu.memory_space<vmem>>, %arg7: memref<1x8xf32, #tpu.memory_space<vmem>>, %arg8: memref<8x8xf32, #tpu.memory_space<vmem>>) attributes {dimension_semantics = [#tpu.dimension_semantics<parallel>], iteration_bounds = array<i64: 1>, scalar_prefetch = 0 : i64, scratch_operands = 0 : i64, tpu.core_type = #tpu.core_type<tc>, window_params = [{transform_indices = @transform_0, window_bounds = array<i64: 8, 4>}, {pipeline_mode = #tpu.pipeline_mode<synchronous>, transform_indices = @transform_1, window_bounds = array<i64: 4, 128>}, {pipeline_mode = #tpu.pipeline_mode<synchronous>, transform_indices = @transform_2, window_bounds = array<i64: 1, 128>}, {pipeline_mode = #tpu.pipeline_mode<synchronous>, transform_indices = @transform_3, window_bounds = array<i64: 128, 128>}, {pipeline_mode = #tpu.pipeline_mode<synchronous>, transform_indices = @transform_4, window_bounds = array<i64: 1, 128>}, {pipeline_mode = #tpu.pipeline_mode<synchronous>, transform_indices = @transform_5, window_bounds = array<i64: 128, 8>}, {pipeline_mode = #tpu.pipeline_mode<synchronous>, transform_indices = @transform_6, window_bounds = array<i64: 1, 8>}, {transform_indices = @transform_7, window_bounds = array<i64: 8, 8>}]} {
    %c0 = arith.constant 0 : index
    %c0_0 = arith.constant 0 : index
    %0 = vector.load %arg1[%c0, %c0_0] : memref<8x4xf32, #tpu.memory_space<vmem>>, vector<8x4xf32>
    %c0_1 = arith.constant 0 : index
    %c0_2 = arith.constant 0 : index
    %1 = vector.load %arg3[%c0_1, %c0_2] : memref<1x128xf32, #tpu.memory_space<vmem>>, vector<1x128xf32>
    %2 = vector.shape_cast %1 : vector<1x128xf32> to vector<1x128xf32>
    %3 = vector.broadcast %2 : vector<1x128xf32> to vector<8x128xf32>
    %4 = vector.extract_strided_slice %0 {offsets = [0, 0], sizes = [8, 1], strides = [1, 1]} : vector<8x4xf32> to vector<8x1xf32>
    %c0_3 = arith.constant 0 : index
    %c0_4 = arith.constant 0 : index
    %5 = vector.load %arg2[%c0_3, %c0_4] : memref<4x128xf32, #tpu.memory_space<vmem>>, vector<1x128xf32>
    %6 = vector.broadcast %4 : vector<8x1xf32> to vector<8x128xf32>
    %7 = vector.broadcast %5 : vector<1x128xf32> to vector<8x128xf32>
    %8 = arith.mulf %6, %7 : vector<8x128xf32>
    %9 = arith.addf %3, %8 : vector<8x128xf32>
    %10 = vector.extract_strided_slice %0 {offsets = [0, 1], sizes = [8, 1], strides = [1, 1]} : vector<8x4xf32> to vector<8x1xf32>
    %c1 = arith.constant 1 : index
    %c0_5 = arith.constant 0 : index
    %11 = vector.load %arg2[%c1, %c0_5] : memref<4x128xf32, #tpu.memory_space<vmem>>, vector<1x128xf32>
    %12 = vector.broadcast %10 : vector<8x1xf32> to vector<8x128xf32>
    %13 = vector.broadcast %11 : vector<1x128xf32> to vector<8x128xf32>
    %14 = arith.mulf %12, %13 : vector<8x128xf32>
    %15 = arith.addf %9, %14 : vector<8x128xf32>
    %16 = vector.extract_strided_slice %0 {offsets = [0, 2], sizes = [8, 1], strides = [1, 1]} : vector<8x4xf32> to vector<8x1xf32>
    %c2 = arith.constant 2 : index
    %c0_6 = arith.constant 0 : index
    %17 = vector.load %arg2[%c2, %c0_6] : memref<4x128xf32, #tpu.memory_space<vmem>>, vector<1x128xf32>
    %18 = vector.broadcast %16 : vector<8x1xf32> to vector<8x128xf32>
    %19 = vector.broadcast %17 : vector<1x128xf32> to vector<8x128xf32>
    %20 = arith.mulf %18, %19 : vector<8x128xf32>
    %21 = arith.addf %15, %20 : vector<8x128xf32>
    %22 = vector.extract_strided_slice %0 {offsets = [0, 3], sizes = [8, 1], strides = [1, 1]} : vector<8x4xf32> to vector<8x1xf32>
    %c3 = arith.constant 3 : index
    %c0_7 = arith.constant 0 : index
    %23 = vector.load %arg2[%c3, %c0_7] : memref<4x128xf32, #tpu.memory_space<vmem>>, vector<1x128xf32>
    %24 = vector.broadcast %22 : vector<8x1xf32> to vector<8x128xf32>
    %25 = vector.broadcast %23 : vector<1x128xf32> to vector<8x128xf32>
    %26 = arith.mulf %24, %25 : vector<8x128xf32>
    %27 = arith.addf %21, %26 : vector<8x128xf32>
    %cst = arith.constant 0.000000e+00 : f32
    %28 = vector.broadcast %cst : f32 to vector<8x128xf32>
    %29 = arith.maximumf %27, %28 : vector<8x128xf32>
    %c0_8 = arith.constant 0 : index
    %c0_9 = arith.constant 0 : index
    %30 = vector.load %arg4[%c0_8, %c0_9] : memref<128x128xf32, #tpu.memory_space<vmem>>, vector<128x128xf32>
    %cst_10 = arith.constant dense<0.000000e+00> : vector<8x128xf32>
    %31 = tpu.matmul %29, %30, %cst_10 {dimension_numbers = #tpu.dot_dimension_numbers<[1], [0], [0], [1], [0, 0, 1, 1], [], []>} : vector<8x128xf32>, vector<128x128xf32>, vector<8x128xf32> -> vector<8x128xf32>
    %c0_11 = arith.constant 0 : index
    %c0_12 = arith.constant 0 : index
    %32 = vector.load %arg5[%c0_11, %c0_12] : memref<1x128xf32, #tpu.memory_space<vmem>>, vector<1x128xf32>
    %33 = vector.broadcast %32 : vector<1x128xf32> to vector<8x128xf32>
    %34 = arith.addf %31, %33 : vector<8x128xf32>
    %cst_13 = arith.constant 0.000000e+00 : f32
    %35 = vector.broadcast %cst_13 : f32 to vector<8x128xf32>
    %36 = arith.maximumf %34, %35 : vector<8x128xf32>
    %c0_14 = arith.constant 0 : index
    %c0_15 = arith.constant 0 : index
    %37 = vector.load %arg6[%c0_14, %c0_15] : memref<128x8xf32, #tpu.memory_space<vmem>>, vector<128x8xf32>
    %cst_16 = arith.constant dense<0.000000e+00> : vector<8x8xf32>
    %38 = tpu.matmul %36, %37, %cst_16 {dimension_numbers = #tpu.dot_dimension_numbers<[1], [0], [0], [1], [0, 0, 1, 1], [], []>} : vector<8x128xf32>, vector<128x8xf32>, vector<8x8xf32> -> vector<8x8xf32>
    %c0_17 = arith.constant 0 : index
    %c0_18 = arith.constant 0 : index
    %39 = vector.load %arg7[%c0_17, %c0_18] : memref<1x8xf32, #tpu.memory_space<vmem>>, vector<1x8xf32>
    %40 = vector.broadcast %39 : vector<1x8xf32> to vector<8x8xf32>
    %41 = arith.addf %38, %40 : vector<8x8xf32>
    %c0_19 = arith.constant 0 : index
    %c0_20 = arith.constant 0 : index
    %42 = vector.load %arg8[%c0_19, %c0_20] : memref<8x8xf32, #tpu.memory_space<vmem>>, vector<8x8xf32>
    tpu.vector_store %arg8[%c0_19, %c0_20], %41 {strides = array<i32>} : memref<8x8xf32, #tpu.memory_space<vmem>>, vector<8x8xf32>,
    return
  }
  func.func @transform_0(%arg0: i32) -> (i32, i32) {
    %c0_i32 = arith.constant 0 : i32
    %c0_i32_0 = arith.constant 0 : i32
    return %arg0, %c0_i32 : i32, i32
  }
  func.func @transform_1(%arg0: i32) -> (i32, i32) {
    %c0_i32 = arith.constant 0 : i32
    %c0_i32_0 = arith.constant 0 : i32
    %c0_i32_1 = arith.constant 0 : i32
    return %c0_i32, %c0_i32_0 : i32, i32
  }
  func.func @transform_2(%arg0: i32) -> (i32, i32) {
    %c0_i32 = arith.constant 0 : i32
    %c0_i32_0 = arith.constant 0 : i32
    %c0_i32_1 = arith.constant 0 : i32
    return %c0_i32, %c0_i32_0 : i32, i32
  }
  func.func @transform_3(%arg0: i32) -> (i32, i32) {
    %c0_i32 = arith.constant 0 : i32
    %c0_i32_0 = arith.constant 0 : i32
    %c0_i32_1 = arith.constant 0 : i32
    return %c0_i32, %c0_i32_0 : i32, i32
  }
  func.func @transform_4(%arg0: i32) -> (i32, i32) {
    %c0_i32 = arith.constant 0 : i32
    %c0_i32_0 = arith.constant 0 : i32
    %c0_i32_1 = arith.constant 0 : i32
    return %c0_i32, %c0_i32_0 : i32, i32
  }
  func.func @transform_5(%arg0: i32) -> (i32, i32) {
    %c0_i32 = arith.constant 0 : i32
    %c0_i32_0 = arith.constant 0 : i32
    %c0_i32_1 = arith.constant 0 : i32
    return %c0_i32, %c0_i32_0 : i32, i32
  }
  func.func @transform_6(%arg0: i32) -> (i32, i32) {
    %c0_i32 = arith.constant 0 : i32
    %c0_i32_0 = arith.constant 0 : i32
    %c0_i32_1 = arith.constant 0 : i32
    return %c0_i32, %c0_i32_0 : i32, i32
  }
  func.func @transform_7(%arg0: i32) -> (i32, i32) {
    %c0_i32 = arith.constant 0 : i32
    %c0_i32_0 = arith.constant 0 : i32
    return %arg0, %c0_i32 : i32, i32
  }
}

</mosaic_0001>

<llo_original>
// kernel: tpu_custom_call.1
$region0: #{tpu_custom_call.1}
  #allocation0 [shape = 'u32[]', space=smem, size = 0x4, offset = 0x4, fixed_abs, tag = 'smem constant byte address 0x4 - core index']
  #allocation1 [shape = 'u32[72,128]{1,0:T(1,128)}', space=vmem, size = 0x9000, scoped, tag = 'internal scratch']
  %s0 = inlined_call_operand.vmem [shape: f32[8,4], index: 0, kind: input, shape index: {}]
  %s1 = inlined_call_operand.vmem [shape: f32[4,128], index: 1, kind: input, shape index: {}]
  %s2 = inlined_call_operand.vmem [shape: f32[1,128], index: 2, kind: input, shape index: {}]
  %s3 = inlined_call_operand.vmem [shape: f32[128,128], index: 3, kind: input, shape index: {}]
  %s4 = inlined_call_operand.vmem [shape: f32[1,128], index: 4, kind: input, shape index: {}]
  %s5 = inlined_call_operand.vmem [shape: f32[128,8], index: 5, kind: input, shape index: {}]
  %s6 = inlined_call_operand.vmem [shape: f32[1,8], index: 6, kind: input, shape index: {}]
  %s7 = inlined_call_operand.hbm [shape: f32[8,8], index: 7, kind: output, shape index: {}]
  %s8 = sld [smem:[#allocation0]]
  $region38: #{tpu_custom_call.1} parent=0
    _
  %s10 = ssub.s32 1, %s8
  %s11 = scalar_select 0, %s10, %s8
  $region1: #{tpu_custom_call.1} parent=0
    #allocation2 [shape = 'u8[4096]{0}', space=vmem, size = 0x1000, scoped, tag = 'output window, operand 0, single buffered']
    #allocation3 [shape = 's32[1]{0}', space=sflag, size = 0x4, scoped, tag = 'scoped memory for tpu_custom_call.1']
    %12 = vsyncpa [#allocation3], 0
    // Predicated region
    $region2: #{tpu_custom_call.1} parent=1 // pred_check
      _
    $region3: #{tpu_custom_call.1} parent=1 // pred_check_branch
      %14 = sbr.rel (0) target = $region5
    $region4: #{tpu_custom_call.1} parent=1 // pred_region
      _
    $region5: #{tpu_custom_call.1} parent=1 // pred_fallthru
      _
    // Predicated region
    $region6: #{tpu_custom_call.1} parent=1 // pred_check
      _
    $region7: #{tpu_custom_call.1} parent=1 // pred_check_branch
      %16 = sbr.rel (0) target = $region9
    $region8: #{tpu_custom_call.1} parent=1 // pred_region
      _
    $region9: #{tpu_custom_call.1} parent=1 // pred_fallthru
      _
    // Predicated region
    $region10: #{tpu_custom_call.1} parent=1 // pred_check
      _
    $region11: #{tpu_custom_call.1} parent=1 // pred_check_branch
      %18 = sbr.rel (0) target = $region13
    $region12: #{tpu_custom_call.1} parent=1 // pred_region
      _
    $region13: #{tpu_custom_call.1} parent=1 // pred_fallthru
      _
    // Predicated region
    $region14: #{tpu_custom_call.1} parent=1 // pred_check
      _
    $region15: #{tpu_custom_call.1} parent=1 // pred_check_branch
      %20 = sbr.rel (0) target = $region17
    $region16: #{tpu_custom_call.1} parent=1 // pred_region
      _
    $region17: #{tpu_custom_call.1} parent=1 // pred_fallthru
      _
    // Predicated region
    $region18: #{tpu_custom_call.1} parent=1 // pred_check
      _
    $region19: #{tpu_custom_call.1} parent=1 // pred_check_branch
      %22 = sbr.rel (0) target = $region21
    $region20: #{tpu_custom_call.1} parent=1 // pred_region
      _
    $region21: #{tpu_custom_call.1} parent=1 // pred_fallthru
      _
    // Predicated region
    $region22: #{tpu_custom_call.1} parent=1 // pred_check
      _
    $region23: #{tpu_custom_call.1} parent=1 // pred_check_branch
      %24 = sbr.rel (0) target = $region25
    $region24: #{tpu_custom_call.1} parent=1 // pred_region
      _
    $region25: #{tpu_custom_call.1} parent=1 // pred_fallthru
      _
    // Predicated region
    $region26: #{tpu_custom_call.1} parent=1 // pred_check
      _
    $region27: #{tpu_custom_call.1} parent=1 // pred_check_branch
      %26 = sbr.rel (0) target = $region29
    $region28: #{tpu_custom_call.1} parent=1 // pred_region
      _
    $region29: #{tpu_custom_call.1} parent=1 // pred_fallthru
      _
    %v27 = vld [vmem:[%s0] sm:$0xff]
    %v28 = vld [vmem:[%s2] sm:$0x1]
    %v30 = vperm.slane %v28, 0
    %v32 = vld [vmem:[%s1] sm:$0x1]
    %34 = vset.pattern.permute.xlu0 0
    %35 = vperm.xlu0 %34, %v27
    %v36 = vpop.permute.xlu0 %35
    %v38 = vperm.slane %v32, 0
    %v39 = vmul.f32 %v36, %v38
    %v40 = vadd.f32 %v30, %v39
    %v41 = vld [vmem:[%s1 + $0x1] sm:$0x1]
    %42 = vset.pattern.permute.xlu0 1
    %43 = vperm.xlu0 %42, %v27
    %v44 = vpop.permute.xlu0 %43
    %v46 = vperm.slane %v41, 0
    %v47 = vmul.f32 %v44, %v46
    %v48 = vadd.f32 %v40, %v47
    %v49 = vld [vmem:[%s1 + $0x2] sm:$0x1]
    %50 = vset.pattern.permute.xlu0 2
    %51 = vperm.xlu0 %50, %v27
    %v52 = vpop.permute.xlu0 %51
    %v54 = vperm.slane %v49, 0
    %v55 = vmul.f32 %v52, %v54
    %v56 = vadd.f32 %v48, %v55
    %v57 = vld [vmem:[%s1 + $0x3] sm:$0x1]
    %58 = vset.pattern.permute.xlu0 3
    %59 = vperm.xlu0 %58, %v27
    %v60 = vpop.permute.xlu0 %59
    %v62 = vperm.slane %v57, 0
    %v63 = vmul.f32 %v60, %v62
    %v64 = vadd.f32 %v56, %v63
    %v65 = vmax.f32 %v64, 0.0
    %v66 = vld [vmem:[%s3] sm:$0xff]
    %v67 = vld [vmem:[%s3 + $0x8] sm:$0xff]
    %v68 = vld [vmem:[%s3 + $0x10] sm:$0xff]
    %v69 = vld [vmem:[%s3 + $0x18] sm:$0xff]
    %v70 = vld [vmem:[%s3 + $0x20] sm:$0xff]
    %v71 = vld [vmem:[%s3 + $0x28] sm:$0xff]
    %v72 = vld [vmem:[%s3 + $0x30] sm:$0xff]
    %v73 = vld [vmem:[%s3 + $0x38] sm:$0xff]
    %v74 = vld [vmem:[%s3 + $0x40] sm:$0xff]
    %v75 = vld [vmem:[%s3 + $0x48] sm:$0xff]
    %v76 = vld [vmem:[%s3 + $0x50] sm:$0xff]
    %v77 = vld [vmem:[%s3 + $0x58] sm:$0xff]
    %v78 = vld [vmem:[%s3 + $0x60] sm:$0xff]
    %v79 = vld [vmem:[%s3 + $0x68] sm:$0xff]
    %v80 = vld [vmem:[%s3 + $0x70] sm:$0xff]
    %v81 = vld [vmem:[%s3 + $0x78] sm:$0xff]
    %v82 = vld [vmem:[%s4] sm:$0x1]
    %v84 = vperm.slane %v82, 0
    %86 = vmatpush.msra.mxu0 %v81
    %87 = vmatpush.msra.mxu0 %v80
    %88 = vmatpush.msra.mxu0 %v79
    %89 = vmatpush.msra.mxu0 %v78
    %90 = vmatpush.msra.mxu0 %v77
    %91 = vmatpush.msra.mxu0 %v76
    %92 = vmatpush.msra.mxu0 %v75
    %93 = vmatpush.msra.mxu0 %v74
    %94 = vmatpush.msra.mxu0 %v73
    %95 = vmatpush.msra.mxu0 %v72
    %96 = vmatpush.msra.mxu0 %v71
    %97 = vmatpush.msra.mxu0 %v70
    %98 = vmatpush.msra.mxu0 %v69
    %99 = vmatpush.msra.mxu0 %v68
    %100 = vmatpush.msra.mxu0 %v67
    %101 = vmatpush.msra.mxu0 %v66
    %102 = vmatmul.f32.gmra.mxu0 %v65
    %v103 = vpop.f32.mrf.mxu0
    %v104 = vadd.f32 %v84, %v103
    %105 = vdwg.mxu0
    %v106 = vmax.f32 %v104, 0.0
    %v107 = vld [vmem:[%s5] sm:$0xff]
    %v108 = vld [vmem:[%s5 + $0x8] sm:$0xff]
    %v109 = vld [vmem:[%s5 + $0x10] sm:$0xff]
    %v110 = vld [vmem:[%s5 + $0x18] sm:$0xff]
    %v111 = vld [vmem:[%s5 + $0x20] sm:$0xff]
    %v112 = vld [vmem:[%s5 + $0x28] sm:$0xff]
    %v113 = vld [vmem:[%s5 + $0x30] sm:$0xff]
    %v114 = vld [vmem:[%s5 + $0x38] sm:$0xff]
    %v115 = vld [vmem:[%s5 + $0x40] sm:$0xff]
    %v116 = vld [vmem:[%s5 + $0x48] sm:$0xff]
    %v117 = vld [vmem:[%s5 + $0x50] sm:$0xff]
    %v118 = vld [vmem:[%s5 + $0x58] sm:$0xff]
    %v119 = vld [vmem:[%s5 + $0x60] sm:$0xff]
    %v120 = vld [vmem:[%s5 + $0x68] sm:$0xff]
    %v121 = vld [vmem:[%s5 + $0x70] sm:$0xff]
    %v122 = vld [vmem:[%s5 + $0x78] sm:$0xff]
    %v123 = vld [vmem:[%s6] sm:$0x1]
    %v125 = vperm.slane %v123, 0
    %127 = vmatpush.msra.mxu0 %v122
    %128 = vmatpush.msra.mxu0 %v121
    %129 = vmatpush.msra.mxu0 %v120
    %130 = vmatpush.msra.mxu0 %v119
    %131 = vmatpush.msra.mxu0 %v118
    %132 = vmatpush.msra.mxu0 %v117
    %133 = vmatpush.msra.mxu0 %v116
    %134 = vmatpush.msra.mxu0 %v115
    %135 = vmatpush.msra.mxu0 %v114
    %136 = vmatpush.msra.mxu0 %v113
    %137 = vmatpush.msra.mxu0 %v112
    %138 = vmatpush.msra.mxu0 %v111
    %139 = vmatpush.msra.mxu0 %v110
    %140 = vmatpush.msra.mxu0 %v109
    %141 = vmatpush.msra.mxu0 %v108
    %142 = vmatpush.msra.mxu0 %v107
    %143 = vmatmul.f32.gmra.mxu0 %v106
    %v144 = vpop.f32.mrf.mxu0
    %v145 = vadd.f32 %v125, %v144
    %146 = vdwg.mxu0
    %vm147 = vcmask 64512
    %148 = vst.msk [vmem:[#allocation2] sm:$0xff] %vm147, %v145
    // Predicated region
    $region30: #{tpu_custom_call.1} parent=1 // pred_check
      _
    $region31: #{tpu_custom_call.1} parent=1 // pred_check_branch
      %150 = sbr.rel (0) target = $region33
    $region32: #{tpu_custom_call.1} parent=1 // pred_region
      %152 = vsyncadd [#allocation3], 0
      %s154 = sshll.u32 [#allocation2], 4
      %s155 = int_to_ptr.vmem [resolvable:$true] %s154
      %s156 = sshll.u32 %s7, 4
      %s157 = int_to_ptr.hbm [resolvable:$true] %s156
      %159 = dma.vmem_to_hbm [thread:$0]  %s155, 128, %s157, [#allocation3]
    $region33: #{tpu_custom_call.1} parent=1 // pred_fallthru
      _
    // Predicated region
    $region34: #{tpu_custom_call.1} parent=1 // pred_check
      _
    $region35: #{tpu_custom_call.1} parent=1 // pred_check_branch
      %161 = sbr.rel (0) target = $region37
    $region36: #{tpu_custom_call.1} parent=1 // pred_region
      %163 = dma.done [#allocation3], 128
    $region37: #{tpu_custom_call.1} parent=1 // pred_fallthru
      _
    %164 = vsyncpa [#allocation3], 1

</llo_original>
